<compile_context>
chip_gen: v7x
topology: tpu7x:2x2x1
jax: 0.10.0
libtpu: 0.0.40
codegen_flags: <defaults>
</compile_context>

<pallas_src>
import functools

import jax
import jax.numpy as jnp
from jax import lax
from jax.experimental import pallas as pl
from jax.experimental.pallas import tpu as pltpu

BN_EPS = 1e-5
OUT_EPS = 0.01


def _round_up(x: int, m: int) -> int:
    return (x + m - 1) // m * m


def _vmem_capacity_bytes() -> int:
    """Per-core VMEM capacity; conservative (v7x) fallback if the query is unavailable."""
    try:
        cap = getattr(pltpu.get_tpu_info(), "vmem_capacity_bytes", None)
        if cap:
            return int(cap)
    except Exception:
        pass
    return 64 << 20  # v7x per-TensorCore VMEM (smallest of v5e/v6e/v7x)


def _choose_tiles(B: int, din_pad: int, dout_pad: int,
                  x_itemsize: int, out_itemsize: int):
    """Pick lane-dense (tile_k, tile_n) that fit the generation's VMEM budget."""
    cap = _vmem_capacity_bytes()
    budget = int(cap * 0.7)

    # Largest tile_n in {512, 256, 128} dividing dout_pad (dout_pad is a multiple of 128).
    tile_n = 128
    for cand in (512, 256, 128):
        if dout_pad % cand == 0:
            tile_n = cand
            break
    # Prefer >= 2 feature tiles so the "parallel" axis can shard across v7x's 2 TensorCores.
    while tile_n > 128 and dout_pad // tile_n < 2:
        tile_n //= 2

    def footprint(tk: int, tn: int) -> int:
        return (2 * B * tk * x_itemsize        # x block, double-buffered
                + 2 * tk * tn * 4              # W block, double-buffered (f32)
                + B * tn * 4                   # f32 accumulator scratch
                + 2 * B * tn * out_itemsize    # output block, double-buffered
                + 2 * 2 * 2 * tn * 4)          # gamma/beta blocks

    tile_k = 128
    for cand in (512, 256, 128):
        if din_pad % cand == 0 and footprint(cand, tile_n) <= budget:
            tile_k = cand
            break
    while tile_n > 128 and footprint(tile_k, tile_n) > budget:
        tile_n //= 2

    fp = footprint(tile_k, tile_n)
    vmem_limit = int(min(int(cap * 0.9), max(32 << 20, 2 * fp + (4 << 20))))
    return tile_n, tile_k, vmem_limit


def _fauv_kernel(x_ref, w_ref, gamma_ref, beta_ref, o_ref, acc_ref):
    # x_ref:     (B, tile_k)
    # w_ref:     (tile_k, tile_n)   -- pre-transposed (Din, Dout) layout, no in-kernel relayout
    # gamma_ref: (1, tile_n)
    # beta_ref:  (1, tile_n)
    # o_ref:     (B, tile_n)
    # acc_ref:   (B, tile_n) f32 scratch accumulator (persists across the K axis)
    k = pl.program_id(1)

    @pl.when(k == 0)
    def _():
        acc_ref[...] = jnp.zeros_like(acc_ref)

    # Linear (no bias) on the MXU, accumulating over Din tiles in f32.
    acc_ref[...] += jnp.dot(x_ref[...], w_ref[...],
                            preferred_element_type=jnp.float32)

    @pl.when(k == pl.num_programs(1) - 1)
    def _():
        y = acc_ref[...]                                        # (B, tile_n) f32
        inv_b = 1.0 / y.shape[0]
        # BatchNorm1d, training mode: biased batch stats over the full batch axis.
        # Two-pass (centered) form kept for numerical safety (vs E[y^2]-mean^2).
        mean = jnp.sum(y, axis=0, keepdims=True) * inv_b        # (1, tile_n)
        centered = y - mean
        var = jnp.sum(centered * centered, axis=0, keepdims=True) * inv_b
        scale = lax.rsqrt(var + BN_EPS) * gamma_ref[...]        # fused affine scale
        z = centered * scale + beta_ref[...]
        o_ref[...] = (z * z + OUT_EPS).astype(o_ref.dtype)


def _reference(x, w, gamma, beta):
    y = x @ w.T
    mean = jnp.mean(y, axis=0, keepdims=True)
    var = jnp.mean((y - mean) ** 2, axis=0, keepdims=True)
    z = gamma[None, :] * (y - mean) / jnp.sqrt(var + BN_EPS) + beta[None, :]
    return z * z + OUT_EPS


@functools.partial(jax.jit, static_argnames=("use_pallas",))
def features_as_uncorrelated_variance(x, w, gamma, beta, *, use_pallas=None):
    """x: (B, Din); w: (Dout, Din) (PyTorch Linear layout); gamma/beta: (Dout,)."""
    B, Din = x.shape
    Dout = w.shape[0]

    # Tiny shapes: per-call overhead + padding waste dominate -> plain fused jnp is faster.
    if use_pallas is None:
        use_pallas = (Din >= 128 and Dout >= 64 and B >= 8)
    if not use_pallas:
        return _reference(x, w, gamma, beta)

    din_pad = _round_up(Din, 128)
    dout_pad = _round_up(Dout, 128)
    tile_n, tile_k, vmem_limit = _choose_tiles(
        B, din_pad, dout_pad, x.dtype.itemsize, x.dtype.itemsize)

    # One wrapper-side transpose+pad of W (to (din_pad, dout_pad)); zero-padding Din adds
    # nothing to the contraction, padded Dout columns are sliced off below.  Pads are skipped
    # entirely when the widths are already aligned.
    w_t = w.T
    if din_pad != Din or dout_pad != Dout:
        w_t = jnp.pad(w_t, ((0, din_pad - Din), (0, dout_pad - Dout)))
    x_p = x if din_pad == Din else jnp.pad(x, ((0, 0), (0, din_pad - Din)))
    if dout_pad != Dout:
        g_p = jnp.pad(gamma, (0, dout_pad - Dout))
        b_p = jnp.pad(beta, (0, dout_pad - Dout))
    else:
        g_p, b_p = gamma, beta
    g_p = g_p.reshape(1, dout_pad)
    b_p = b_p.reshape(1, dout_pad)

    n_j = dout_pad // tile_n
    n_k = din_pad // tile_k

    cost = pl.CostEstimate(
        flops=2 * B * din_pad * dout_pad,
        transcendentals=dout_pad,  # rsqrt per feature
        bytes_accessed=(B * din_pad * x.dtype.itemsize * n_j
                        + din_pad * dout_pad * w.dtype.itemsize
                        + B * dout_pad * x.dtype.itemsize),
    )

    out_p = pl.pallas_call(
        _fauv_kernel,
        out_shape=jax.ShapeDtypeStruct((B, dout_pad), x.dtype),
        grid=(n_j, n_k),
        in_specs=[
            pl.BlockSpec((B, tile_k), lambda j, k: (0, k)),        # x K-tile
            pl.BlockSpec((tile_k, tile_n), lambda j, k: (k, j)),   # W tile (pre-transposed)
            pl.BlockSpec((1, tile_n), lambda j, k: (0, j)),        # gamma tile
            pl.BlockSpec((1, tile_n), lambda j, k: (0, j)),        # beta tile
        ],
        out_specs=pl.BlockSpec((B, tile_n), lambda j, k: (0, j)),  # resident across K
        scratch_shapes=[pltpu.VMEM((B, tile_n), jnp.float32)],
        compiler_params=pltpu.CompilerParams(
            # Feature tiles are independent (BN stats are per-feature over the full batch);
            # K is a reduction axis and must be "arbitrary".
            dimension_semantics=("parallel", "arbitrary"),
            vmem_limit_bytes=vmem_limit,
        ),
        cost_estimate=cost,
    )(x_p, w_t, g_p, b_p)

    return out_p if dout_pad == Dout else out_p[:, :Dout]


if __name__ == "__main__":
    key = jax.random.PRNGKey(0)
    k1, k2, k3, k4, k5, k6 = jax.random.split(key, 6)

    # --- Test 1: Pallas path forced; shapes exercise Din/Dout padding, the K-accumulation
    #             grid (3 K steps) and >= 2 feature tiles. ---
    B1, DIN1, DOUT1 = 16, 300, 200
    x1 = jax.random.normal(k1, (B1, DIN1), dtype=jnp.float32)
    bound1 = 1.0 / float(DIN1) ** 0.5  # PyTorch nn.Linear init range
    w1 = jax.random.uniform(k2, (DOUT1, DIN1), jnp.float32, -bound1, bound1)
    gamma1 = jax.random.uniform(k3, (DOUT1,), jnp.float32, 0.5, 1.5)
    beta1 = jax.random.normal(k4, (DOUT1,), jnp.float32)

    out1 = jax.block_until_ready(
        features_as_uncorrelated_variance(x1, w1, gamma1, beta1, use_pallas=True))
    ref1 = _reference(x1, w1, gamma1, beta1)
    assert out1.shape == (B1, DOUT1), out1.shape
    assert jnp.allclose(out1, ref1, rtol=1e-5, atol=1e-5), (
        f"max abs err {float(jnp.max(jnp.abs(out1 - ref1)))}")

    # --- Test 2: the module's own tiny sizes + its BN init (gamma*=1e-4, beta=1);
    #             auto path falls back to plain jnp. ---
    B2, DIN2, DOUT2 = 8, 32, 16
    x2 = jax.random.normal(k5, (B2, DIN2), dtype=jnp.float32)
    bound2 = 1.0 / float(DIN2) ** 0.5
    w2 = jax.random.uniform(k6, (DOUT2, DIN2), jnp.float32, -bound2, bound2)
    gamma2 = jnp.full((DOUT2,), 1e-4, jnp.float32)
    beta2 = jnp.ones((DOUT2,), jnp.float32)

    out2 = jax.block_until_ready(
        features_as_uncorrelated_variance(x2, w2, gamma2, beta2))
    ref2 = _reference(x2, w2, gamma2, beta2)
    assert out2.shape == (B2, DOUT2), out2.shape
    assert jnp.allclose(out2, ref2, rtol=1e-5, atol=1e-5), (
        f"max abs err {float(jnp.max(jnp.abs(out2 - ref2)))}")

    print("KERNEL_OK")
</pallas_src>

<mosaic_0001>
module attributes {stable_mosaic.version = 11 : i64} {
  func.func @_fauv_kernel(%arg0: i32, %arg1: i32, %arg2: memref<16x128xf32, #tpu.memory_space<vmem>>, %arg3: memref<128x128xf32, #tpu.memory_space<vmem>>, %arg4: memref<1x128xf32, #tpu.memory_space<vmem>>, %arg5: memref<1x128xf32, #tpu.memory_space<vmem>>, %arg6: memref<16x128xf32, #tpu.memory_space<vmem>>, %arg7: memref<16x128xf32, #tpu.memory_space<vmem>>) attributes {dimension_semantics = [#tpu.dimension_semantics<parallel>, #tpu.dimension_semantics<arbitrary>], iteration_bounds = array<i64: 2, 3>, scalar_prefetch = 0 : i64, scratch_operands = 1 : i64, tpu.core_type = #tpu.core_type<tc>, window_params = [{transform_indices = @transform_0, window_bounds = array<i64: 16, 128>}, {transform_indices = @transform_1, window_bounds = array<i64: 128, 128>}, {transform_indices = @transform_2, window_bounds = array<i64: 1, 128>}, {transform_indices = @transform_3, window_bounds = array<i64: 1, 128>}, {transform_indices = @transform_4, window_bounds = array<i64: 16, 128>}]} {
    %c0_i32 = arith.constant 0 : i32
    %0 = arith.cmpi eq, %arg1, %c0_i32 : i32
    %1 = arith.extui %0 : i1 to i32
    %c0_i32_0 = arith.constant 0 : i32
    %2 = arith.cmpi ne, %1, %c0_i32_0 : i32
    scf.if %2 {
      %cst_9 = arith.constant 0.000000e+00 : f32
      %12 = vector.broadcast %cst_9 : f32 to vector<16x128xf32>
      %c0_10 = arith.constant 0 : index
      %c0_11 = arith.constant 0 : index
      %13 = vector.load %arg7[%c0_10, %c0_11] : memref<16x128xf32, #tpu.memory_space<vmem>>, vector<16x128xf32>
      tpu.vector_store %arg7[%c0_10, %c0_11], %12 {strides = array<i32>} : memref<16x128xf32, #tpu.memory_space<vmem>>, vector<16x128xf32>,
    } else {
    }
    %c0 = arith.constant 0 : index
    %c0_1 = arith.constant 0 : index
    %3 = vector.load %arg7[%c0, %c0_1] : memref<16x128xf32, #tpu.memory_space<vmem>>, vector<16x128xf32>
    %c0_2 = arith.constant 0 : index
    %c0_3 = arith.constant 0 : index
    %4 = vector.load %arg2[%c0_2, %c0_3] : memref<16x128xf32, #tpu.memory_space<vmem>>, vector<16x128xf32>
    %c0_4 = arith.constant 0 : index
    %c0_5 = arith.constant 0 : index
    %5 = vector.load %arg3[%c0_4, %c0_5] : memref<128x128xf32, #tpu.memory_space<vmem>>, vector<128x128xf32>
    %cst = arith.constant dense<0.000000e+00> : vector<16x128xf32>
    %6 = tpu.matmul %4, %5, %cst {dimension_numbers = #tpu.dot_dimension_numbers<[1], [0], [0], [1], [0, 0, 1, 1], [], []>} : vector<16x128xf32>, vector<128x128xf32>, vector<16x128xf32> -> vector<16x128xf32>
    %7 = arith.addf %3, %6 : vector<16x128xf32>
    %c0_6 = arith.constant 0 : index
    %c0_7 = arith.constant 0 : index
    %8 = vector.load %arg7[%c0_6, %c0_7] : memref<16x128xf32, #tpu.memory_space<vmem>>, vector<16x128xf32>
    tpu.vector_store %arg7[%c0_6, %c0_7], %7 {strides = array<i32>} : memref<16x128xf32, #tpu.memory_space<vmem>>, vector<16x128xf32>,
    %c2_i32 = arith.constant 2 : i32
    %9 = arith.cmpi eq, %arg1, %c2_i32 : i32
    %10 = arith.extui %9 : i1 to i32
    %c0_i32_8 = arith.constant 0 : i32
    %11 = arith.cmpi ne, %10, %c0_i32_8 : i32
    scf.if %11 {
      %c0_9 = arith.constant 0 : index
      %c0_10 = arith.constant 0 : index
      %12 = vector.load %arg7[%c0_9, %c0_10] : memref<16x128xf32, #tpu.memory_space<vmem>>, vector<16x128xf32>
      %cst_11 = arith.constant dense<0.000000e+00> : vector<128xf32>
      %13 = vector.multi_reduction <add>, %12, %cst_11 [0] : vector<16x128xf32> to vector<128xf32>
      %14 = vector.shape_cast %13 : vector<128xf32> to vector<1x128xf32>
      %cst_12 = arith.constant 6.250000e-02 : f32
      %15 = vector.broadcast %cst_12 : f32 to vector<1x128xf32>
      %16 = arith.mulf %14, %15 : vector<1x128xf32>
      %17 = vector.broadcast %16 : vector<1x128xf32> to vector<16x128xf32>
      %18 = arith.subf %12, %17 : vector<16x128xf32>
      %19 = arith.mulf %18, %18 : vector<16x128xf32>
      %cst_13 = arith.constant dense<0.000000e+00> : vector<128xf32>
      %20 = vector.multi_reduction <add>, %19, %cst_13 [0] : vector<16x128xf32> to vector<128xf32>
      %21 = vector.shape_cast %20 : vector<128xf32> to vector<1x128xf32>
      %cst_14 = arith.constant 6.250000e-02 : f32
      %22 = vector.broadcast %cst_14 : f32 to vector<1x128xf32>
      %23 = arith.mulf %21, %22 : vector<1x128xf32>
      %cst_15 = arith.constant 9.99999974E-6 : f32
      %24 = vector.broadcast %cst_15 : f32 to vector<1x128xf32>
      %25 = arith.addf %23, %24 : vector<1x128xf32>
      %26 = math.rsqrt %25 : vector<1x128xf32>
      %c0_16 = arith.constant 0 : index
      %c0_17 = arith.constant 0 : index
      %27 = vector.load %arg4[%c0_16, %c0_17] : memref<1x128xf32, #tpu.memory_space<vmem>>, vector<1x128xf32>
      %28 = arith.mulf %26, %27 : vector<1x128xf32>
      %29 = vector.broadcast %28 : vector<1x128xf32> to vector<16x128xf32>
      %30 = arith.mulf %18, %29 : vector<16x128xf32>
      %c0_18 = arith.constant 0 : index
      %c0_19 = arith.constant 0 : index
      %31 = vector.load %arg5[%c0_18, %c0_19] : memref<1x128xf32, #tpu.memory_space<vmem>>, vector<1x128xf32>
      %32 = vector.broadcast %31 : vector<1x128xf32> to vector<16x128xf32>
      %33 = arith.addf %30, %32 : vector<16x128xf32>
      %34 = arith.mulf %33, %33 : vector<16x128xf32>
      %cst_20 = arith.constant 0.00999999977 : f32
      %35 = vector.broadcast %cst_20 : f32 to vector<16x128xf32>
      %36 = arith.addf %34, %35 : vector<16x128xf32>
      %c0_21 = arith.constant 0 : index
      %c0_22 = arith.constant 0 : index
      %37 = vector.load %arg6[%c0_21, %c0_22] : memref<16x128xf32, #tpu.memory_space<vmem>>, vector<16x128xf32>
      tpu.vector_store %arg6[%c0_21, %c0_22], %36 {strides = array<i32>} : memref<16x128xf32, #tpu.memory_space<vmem>>, vector<16x128xf32>,
    } else {
    }
    return
  }
  func.func @transform_0(%arg0: i32, %arg1: i32) -> (i32, i32) {
    %c0_i32 = arith.constant 0 : i32
    %c0_i32_0 = arith.constant 0 : i32
    return %c0_i32, %arg1 : i32, i32
  }
  func.func @transform_1(%arg0: i32, %arg1: i32) -> (i32, i32) {
    %c0_i32 = arith.constant 0 : i32
    return %arg1, %arg0 : i32, i32
  }
  func.func @transform_2(%arg0: i32, %arg1: i32) -> (i32, i32) {
    %c0_i32 = arith.constant 0 : i32
    %c0_i32_0 = arith.constant 0 : i32
    return %c0_i32, %arg0 : i32, i32
  }
  func.func @transform_3(%arg0: i32, %arg1: i32) -> (i32, i32) {
    %c0_i32 = arith.constant 0 : i32
    %c0_i32_0 = arith.constant 0 : i32
    return %c0_i32, %arg0 : i32, i32
  }
  func.func @transform_4(%arg0: i32, %arg1: i32) -> (i32, i32) {
    %c0_i32 = arith.constant 0 : i32
    %c0_i32_0 = arith.constant 0 : i32
    return %c0_i32, %arg0 : i32, i32
  }
}

</mosaic_0001>

<llo_original>
// kernel: features_as_uncorrelated_variance.1
$region0: #{features_as_uncorrelated_variance.1}
  #allocation0 [shape = 'u32[]', space=smem, size = 0x4, offset = 0x4, fixed_abs, tag = 'smem constant byte address 0x4 - core index']
  #allocation1 [shape = 'u32[144,128]{1,0:T(1,128)}', space=vmem, size = 0x12000, scoped, tag = 'internal scratch']
  #allocation2 [shape = 'f32[16,128]{1,0:T(8,128)}', space=vmem, size = 0x2000, scoped, tag = 'scratch operand']
  %s0 = inlined_call_operand.vmem [shape: f32[16,384], index: 0, kind: input, shape index: {}]
  %s1 = inlined_call_operand.vmem [shape: f32[384,256], index: 1, kind: input, shape index: {}]
  %s2 = inlined_call_operand.vmem [shape: f32[1,256], index: 2, kind: input, shape index: {}]
  %s3 = inlined_call_operand.vmem [shape: f32[1,256], index: 3, kind: input, shape index: {}]
  %s4 = inlined_call_operand.hbm [shape: f32[16,256], index: 4, kind: output, shape index: {}]
  %s5 = sld [smem:[#allocation0]]
  $region133: #{features_as_uncorrelated_variance.1} parent=0
    _
  %s7 = ssub.s32 1, %s5
  %s8 = scalar_select 0, %s7, %s5
  $region1: #{features_as_uncorrelated_variance.1} parent=0
    #allocation3 [shape = 'u8[16384]{0}', space=vmem, size = 0x4000, scoped, tag = 'input window, operand 0']
    #allocation4 [shape = 'u8[131072]{0}', space=vmem, size = 0x20000, scoped, tag = 'input window, operand 1']
    #allocation5 [shape = 'u8[16384]{0}', space=vmem, size = 0x4000, scoped, tag = 'output window, operand 0']
    #allocation6 [shape = 's32[2]{0}', space=sflag, size = 0x8, scoped, tag = 'scoped memory for features_as_uncorrelated_variance.1']
    %9 = vsyncpa [#allocation6], 0
    %s10 = scalar_lea.sflag [#allocation6], 1
    %11 = vsyncpa %s10, 0
    loop: start=0, step=1, limit=8
    $region2: #{features_as_uncorrelated_variance.1} parent=1 // loop_pre_header
      _
    $region3: #{features_as_uncorrelated_variance.1} parent=1 // loop_header
      %s13 = sphi 0, %s17
      %p14 = scmp.ge.s32.totalorder %s13, 8
      %s20 = sphi 0, %s32
      %s21 = sphi 0, %s28
      %s22 = sphi 0, %s20
      %s23 = sphi 0, %s21
      %s24 = sphi 0, %s22
      %s25 = sphi 0, %s23
      %s35 = sphi 0, %s37
      %s38 = sphi 0, %s35
      %s39 = sphi 0, %s38
      %s55 = sphi 0, %s39
      %s63 = sphi 0, %s65
      %s66 = sphi 0, %s63
      %s67 = sphi 0, %s66
      %s83 = sphi 0, %s67
      %s89 = sphi 0, %s91
      %s92 = sphi 0, %s89
      %s93 = sphi 0, %s92
      %s109 = sphi 0, %s93
      %s115 = sphi 0, %s117
      %s118 = sphi 0, %s115
      %s119 = sphi 0, %s118
      %s135 = sphi 0, %s119
      %s141 = sphi 0, %s143
      %s144 = sphi 0, %s141
      %s145 = sphi 0, %s144
      %s161 = sphi 0, %s145
    $region4: #{features_as_uncorrelated_variance.1} parent=1 // loop_header_branch
      %16 = sbr.rel (%p14) target = $region8
    $region5: #{features_as_uncorrelated_variance.1} parent=1 // loop_body
      %s18 = ssub.s32 %s13, 1
      %s19 = ssub.s32 %s13, 2
      %s26 = sadd.s32 1, %s21
      %p27 = scmp.ge.s32.totalorder %s26, 3
      %s28 = scalar_select %p27, 0, %s26
      %s29 = sadd.s32 1, %s20
      %s30 = scalar_select %p27, %s29, %s20
      %p31 = scmp.ge.s32.totalorder %s30, 2
      %s32 = scalar_select %p31, 0, %s30
      %s33 = ssub.s32 %s21, %s28
      %p34 = scmp.eq.s32.totalorder %s33, 0
      %s36 = sadd.s32 %s35, 1
      %s37 = scalar_select %p34, %s35, %s36
      %p40 = pneg %p34
      %p41 = scmp.eq.s32.totalorder %s13, 5
      %p42 = por %p40, %p41
      %p43 = scmp.ne.s32.totalorder %s35, %s38
      %p44 = scmp.eq.s32.totalorder %s13, 0
      %p45 = por %p43, %p44
      %p46 = scmp.ne.s32.totalorder %s35, %s38
      %p47 = scmp.eq.s32.totalorder %s18, 5
      %p48 = por %p46, %p47
      %p49 = scmp.ne.s32.totalorder %s38, %s39
      %p50 = scmp.eq.s32.totalorder %s18, 0
      %p51 = por %p49, %p50
      %p52 = scmp.ne.s32.totalorder %s38, %s39
      %p53 = scmp.eq.s32.totalorder %s19, 5
      %p54 = por %p52, %p53
      %p56 = scmp.ne.s32.totalorder %s39, %s55
      %p57 = scmp.eq.s32.totalorder %s19, 0
      %p58 = por %p56, %p57
      %s59 = ssub.s32 %s21, %s28
      %s60 = ssub.s32 %s20, %s32
      %s61 = sor.u32 %s59, %s60
      %p62 = scmp.eq.s32.totalorder %s61, 0
      %s64 = sadd.s32 %s63, 1
      %s65 = scalar_select %p62, %s63, %s64
      %p68 = pneg %p62
      %p69 = scmp.eq.s32.totalorder %s13, 5
      %p70 = por %p68, %p69
      %p71 = scmp.ne.s32.totalorder %s63, %s66
      %p72 = scmp.eq.s32.totalorder %s13, 0
      %p73 = por %p71, %p72
      %p74 = scmp.ne.s32.totalorder %s63, %s66
      %p75 = scmp.eq.s32.totalorder %s18, 5
      %p76 = por %p74, %p75
      %p77 = scmp.ne.s32.totalorder %s66, %s67
      %p78 = scmp.eq.s32.totalorder %s18, 0
      %p79 = por %p77, %p78
      %p80 = scmp.ne.s32.totalorder %s66, %s67
      %p81 = scmp.eq.s32.totalorder %s19, 5
      %p82 = por %p80, %p81
      %p84 = scmp.ne.s32.totalorder %s67, %s83
      %p85 = scmp.eq.s32.totalorder %s19, 0
      %p86 = por %p84, %p85
      %s87 = ssub.s32 %s20, %s32
      %p88 = scmp.eq.s32.totalorder %s87, 0
      %s90 = sadd.s32 %s89, 1
      %s91 = scalar_select %p88, %s89, %s90
      %p94 = pneg %p88
      %p95 = scmp.eq.s32.totalorder %s13, 5
      %p96 = por %p94, %p95
      %p97 = scmp.ne.s32.totalorder %s89, %s92
      %p98 = scmp.eq.s32.totalorder %s13, 0
      %p99 = por %p97, %p98
      %p100 = scmp.ne.s32.totalorder %s89, %s92
      %p101 = scmp.eq.s32.totalorder %s18, 5
      %p102 = por %p100, %p101
      %p103 = scmp.ne.s32.totalorder %s92, %s93
      %p104 = scmp.eq.s32.totalorder %s18, 0
      %p105 = por %p103, %p104
      %p106 = scmp.ne.s32.totalorder %s92, %s93
      %p107 = scmp.eq.s32.totalorder %s19, 5
      %p108 = por %p106, %p107
      %p110 = scmp.ne.s32.totalorder %s93, %s109
      %p111 = scmp.eq.s32.totalorder %s19, 0
      %p112 = por %p110, %p111
      %s113 = ssub.s32 %s20, %s32
      %p114 = scmp.eq.s32.totalorder %s113, 0
      %s116 = sadd.s32 %s115, 1
      %s117 = scalar_select %p114, %s115, %s116
      %p120 = pneg %p114
      %p121 = scmp.eq.s32.totalorder %s13, 5
      %p122 = por %p120, %p121
      %p123 = scmp.ne.s32.totalorder %s115, %s118
      %p124 = scmp.eq.s32.totalorder %s13, 0
      %p125 = por %p123, %p124
      %p126 = scmp.ne.s32.totalorder %s115, %s118
      %p127 = scmp.eq.s32.totalorder %s18, 5
      %p128 = por %p126, %p127
      %p129 = scmp.ne.s32.totalorder %s118, %s119
      %p130 = scmp.eq.s32.totalorder %s18, 0
      %p131 = por %p129, %p130
      %p132 = scmp.ne.s32.totalorder %s118, %s119
      %p133 = scmp.eq.s32.totalorder %s19, 5
      %p134 = por %p132, %p133
      %p136 = scmp.ne.s32.totalorder %s119, %s135
      %p137 = scmp.eq.s32.totalorder %s19, 0
      %p138 = por %p136, %p137
      %s139 = ssub.s32 %s20, %s32
      %p140 = scmp.eq.s32.totalorder %s139, 0
      %s142 = sadd.s32 %s141, 1
      %s143 = scalar_select %p140, %s141, %s142
      %p146 = pneg %p140
      %p147 = scmp.eq.s32.totalorder %s13, 5
      %p148 = por %p146, %p147
      %p149 = scmp.ne.s32.totalorder %s141, %s144
      %p150 = scmp.eq.s32.totalorder %s13, 0
      %p151 = por %p149, %p150
      %p152 = scmp.ne.s32.totalorder %s141, %s144
      %p153 = scmp.eq.s32.totalorder %s18, 5
      %p154 = por %p152, %p153
      %p155 = scmp.ne.s32.totalorder %s144, %s145
      %p156 = scmp.eq.s32.totalorder %s18, 0
      %p157 = por %p155, %p156
      %p158 = scmp.ne.s32.totalorder %s144, %s145
      %p159 = scmp.eq.s32.totalorder %s19, 5
      %p160 = por %p158, %p159
      %p162 = scmp.ne.s32.totalorder %s145, %s161
      %p163 = scmp.eq.s32.totalorder %s19, 0
      %p164 = por %p162, %p163
      %p165 = scmp.le.s32.totalorder 1, %s13
      %p166 = scmp.lt.s32.totalorder %s13, 7
      %p167 = pnand %p165, %p166
      %p168 = pneg %p167
      // Predicated region
      $region9: #{features_as_uncorrelated_variance.1} parent=5 // pred_check
        _
      $region10: #{features_as_uncorrelated_variance.1} parent=5 // pred_check_branch
        %170 = sbr.rel (%p167) target = $region12
      $region11: #{features_as_uncorrelated_variance.1} parent=5 // pred_region
        %s171 = ssub.s32 %s13, 1
      $region12: #{features_as_uncorrelated_variance.1} parent=5 // pred_fallthru
        _
      %p172 = scmp.lt.s32.totalorder %s13, 6
      // Predicated region
      $region13: #{features_as_uncorrelated_variance.1} parent=5 // pred_check
        %p173 = pneg %p172
      $region14: #{features_as_uncorrelated_variance.1} parent=5 // pred_check_branch
        %175 = sbr.rel (%p173) target = $region16
      $region15: #{features_as_uncorrelated_variance.1} parent=5 // pred_region
        // Predicated region
        $region17: #{features_as_uncorrelated_variance.1} parent=15 // pred_check
          %p176 = pneg %p45
        $region18: #{features_as_uncorrelated_variance.1} parent=15 // pred_check_branch
          %178 = sbr.rel (%p176) target = $region20
        $region19: #{features_as_uncorrelated_variance.1} parent=15 // pred_region
          %s179 = sand.u32 %s35, 1
          %s180 = sand.u32 %s35, 1
          %s181 = smul.addr %s180, 16
          %s182 = scalar_lea.vmem [#allocation3], %s181
          %s183 = smul.addr %s21, 8
          %s184 = scalar_lea.vmem %s0, %s183
          // Predicated region
          $region21: #{features_as_uncorrelated_variance.1} parent=19 // pred_check
            _
          $region22: #{features_as_uncorrelated_variance.1} parent=19 // pred_check_branch
            %186 = sbr.rel (0) target = $region24
          $region23: #{features_as_uncorrelated_variance.1} parent=19 // pred_region
            // Predicated region
            $region25: #{features_as_uncorrelated_variance.1} parent=23 // pred_check
              _
            $region26: #{features_as_uncorrelated_variance.1} parent=23 // pred_check_branch
              %188 = sbr.rel (0) target = $region28
            $region27: #{features_as_uncorrelated_variance.1} parent=23 // pred_region
              // Predicated region
              $region40: #{features_as_uncorrelated_variance.1} parent=27 // pred_check
                _
              $region41: #{features_as_uncorrelated_variance.1} parent=27 // pred_check_branch
                %205 = sbr.rel (0) target = $region43
              $region42: #{features_as_uncorrelated_variance.1} parent=27 // pred_region
                loop: start=0, step=1, limit=1
                $region44: #{features_as_uncorrelated_variance.1} parent=42 // loop_pre_header
                  _
                $region45: #{features_as_uncorrelated_variance.1} parent=42 // loop_header
                  %s207 = sphi 0, %s211
                  %p208 = scmp.ge.s32.totalorder %s207, 1
                  %s212 = sphi %s184, %s184
                  %s213 = sphi %s182, %s182
                $region46: #{features_as_uncorrelated_variance.1} parent=42 // loop_header_branch
                  %210 = sbr.rel (%p208) target = $region50
                $region47: #{features_as_uncorrelated_variance.1} parent=42 // loop_body
                  %v214 = vld [vmem:[%s212] sm:$0xff]
                  %215 = vst [vmem:[%s213] sm:$0xff] %v214
                  %v216 = vld [vmem:[%s212 + $0x18] sm:$0xff]
                  %217 = vst [vmem:[%s213 + $0x8] sm:$0xff] %v216
                $region48: #{features_as_uncorrelated_variance.1} parent=42 // loop_footer
                  %s211 = sadd.s32 1, %s207
                $region49: #{features_as_uncorrelated_variance.1} parent=42 // loop_footer_branch
                  %206 = sbr.rel target = $region45
                $region50: #{features_as_uncorrelated_variance.1} parent=42 // loop_exit
                  _
              $region43: #{features_as_uncorrelated_variance.1} parent=27 // pred_fallthru
                _
              // Predicated region
              $region51: #{features_as_uncorrelated_variance.1} parent=27 // pred_check
                _
              $region52: #{features_as_uncorrelated_variance.1} parent=27 // pred_check_branch
                %219 = sbr.rel target = $region54
              $region53: #{features_as_uncorrelated_variance.1} parent=27 // pred_region
                _
              $region54: #{features_as_uncorrelated_variance.1} parent=27 // pred_fallthru
                _
            $region28: #{features_as_uncorrelated_variance.1} parent=23 // pred_fallthru
              _
            // Predicated region
            $region29: #{features_as_uncorrelated_variance.1} parent=23 // pred_check
              _
            $region30: #{features_as_uncorrelated_variance.1} parent=23 // pred_check_branch
              %190 = sbr.rel target = $region32
            $region31: #{features_as_uncorrelated_variance.1} parent=23 // pred_region
              loop: start=0, step=1, limit=1
              $region33: #{features_as_uncorrelated_variance.1} parent=31 // loop_pre_header
                _
              $region34: #{features_as_uncorrelated_variance.1} parent=31 // loop_header
                %s193 = sphi 0, %s197
                %p194 = scmp.ge.s32.totalorder %s193, 1
                %s198 = sphi %s184, %s184
                %s199 = sphi %s182, %s182
              $region35: #{features_as_uncorrelated_variance.1} parent=31 // loop_header_branch
                %196 = sbr.rel (%p194) target = $region39
              $region36: #{features_as_uncorrelated_variance.1} parent=31 // loop_body
                %v200 = vld [vmem:[%s198] sm:$0xff]
                %201 = vst [vmem:[%s199] sm:$0xff] %v200
                %v202 = vld [vmem:[%s198 + $0x18] sm:$0xff]
                %203 = vst [vmem:[%s199 + $0x8] sm:$0xff] %v202
              $region37: #{features_as_uncorrelated_variance.1} parent=31 // loop_footer
                %s197 = sadd.s32 1, %s193
              $region38: #{features_as_uncorrelated_variance.1} parent=31 // loop_footer_branch
                %192 = sbr.rel target = $region34
              $region39: #{features_as_uncorrelated_variance.1} parent=31 // loop_exit
                _
            $region32: #{features_as_uncorrelated_variance.1} parent=23 // pred_fallthru
              _
          $region24: #{features_as_uncorrelated_variance.1} parent=19 // pred_fallthru
            _
          %220 = vnop
        $region20: #{features_as_uncorrelated_variance.1} parent=15 // pred_fallthru
          _
        // Predicated region
        $region55: #{features_as_uncorrelated_variance.1} parent=15 // pred_check
          %p221 = pneg %p73
        $region56: #{features_as_uncorrelated_variance.1} parent=15 // pred_check_branch
          %223 = sbr.rel (%p221) target = $region58
        $region57: #{features_as_uncorrelated_variance.1} parent=15 // pred_region
          %s224 = sand.u32 %s63, 1
          %s225 = sand.u32 %s63, 1
          %s226 = smul.addr %s225, 128
          %s227 = scalar_lea.vmem [#allocation4], %s226
          %s228 = smul.u32 16, %s21
          %s229 = smul.addr %s228, 2
          %s230 = sadd.s32 %s20, %s229
          %s231 = smul.addr %s230, 8
          %s232 = scalar_lea.vmem %s1, %s231
          // Predicated region
          $region59: #{features_as_uncorrelated_variance.1} parent=57 // pred_check
            _
          $region60: #{features_as_uncorrelated_variance.1} parent=57 // pred_check_branch
            %234 = sbr.rel (0) target = $region62
          $region61: #{features_as_uncorrelated_variance.1} parent=57 // pred_region
            // Predicated region
            $region63: #{features_as_uncorrelated_variance.1} parent=61 // pred_check
              _
            $region64: #{features_as_uncorrelated_variance.1} parent=61 // pred_check_branch
              %236 = sbr.rel (0) target = $region66
            $region65: #{features_as_uncorrelated_variance.1} parent=61 // pred_region
              // Predicated region
              $region78: #{features_as_uncorrelated_variance.1} parent=65 // pred_check
                _
              $region79: #{features_as_uncorrelated_variance.1} parent=65 // pred_check_branch
                %281 = sbr.rel (0) target = $region81
              $region80: #{features_as_uncorrelated_variance.1} parent=65 // pred_region
                loop: start=0, step=1, limit=1
                $region82: #{features_as_uncorrelated_variance.1} parent=80 // loop_pre_header
                  _
                $region83: #{features_as_uncorrelated_variance.1} parent=80 // loop_header
                  %s283 = sphi 0, %s287
                  %p284 = scmp.ge.s32.totalorder %s283, 1
                  %s288 = sphi %s232, %s232
                  %s289 = sphi %s227, %s227
                $region84: #{features_as_uncorrelated_variance.1} parent=80 // loop_header_branch
                  %286 = sbr.rel (%p284) target = $region88
                $region85: #{features_as_uncorrelated_variance.1} parent=80 // loop_body
                  %v290 = vld [vmem:[%s288] sm:$0xff]
                  %291 = vst [vmem:[%s289] sm:$0xff] %v290
                  %v292 = vld [vmem:[%s288 + $0x10] sm:$0xff]
                  %293 = vst [vmem:[%s289 + $0x8] sm:$0xff] %v292
                  %v294 = vld [vmem:[%s288 + $0x20] sm:$0xff]
                  %295 = vst [vmem:[%s289 + $0x10] sm:$0xff] %v294
                  %v296 = vld [vmem:[%s288 + $0x30] sm:$0xff]
                  %297 = vst [vmem:[%s289 + $0x18] sm:$0xff] %v296
                  %v298 = vld [vmem:[%s288 + $0x40] sm:$0xff]
                  %299 = vst [vmem:[%s289 + $0x20] sm:$0xff] %v298
                  %v300 = vld [vmem:[%s288 + $0x50] sm:$0xff]
                  %301 = vst [vmem:[%s289 + $0x28] sm:$0xff] %v300
                  %v302 = vld [vmem:[%s288 + $0x60] sm:$0xff]
                  %303 = vst [vmem:[%s289 + $0x30] sm:$0xff] %v302
                  %v304 = vld [vmem:[%s288 + $0x70] sm:$0xff]
                  %305 = vst [vmem:[%s289 + $0x38] sm:$0xff] %v304
                  %v306 = vld [vmem:[%s288 + $0x80] sm:$0xff]
                  %307 = vst [vmem:[%s289 + $0x40] sm:$0xff] %v306
                  %v308 = vld [vmem:[%s288 + $0x90] sm:$0xff]
                  %309 = vst [vmem:[%s289 + $0x48] sm:$0xff] %v308
                  %v310 = vld [vmem:[%s288 + $0xa0] sm:$0xff]
                  %311 = vst [vmem:[%s289 + $0x50] sm:$0xff] %v310
                  %v312 = vld [vmem:[%s288 + $0xb0] sm:$0xff]
                  %313 = vst [vmem:[%s289 + $0x58] sm:$0xff] %v312
                  %v314 = vld [vmem:[%s288 + $0xc0] sm:$0xff]
                  %315 = vst [vmem:[%s289 + $0x60] sm:$0xff] %v314
                  %v316 = vld [vmem:[%s288 + $0xd0] sm:$0xff]
                  %317 = vst [vmem:[%s289 + $0x68] sm:$0xff] %v316
                  %v318 = vld [vmem:[%s288 + $0xe0] sm:$0xff]
                  %319 = vst [vmem:[%s289 + $0x70] sm:$0xff] %v318
                  %v320 = vld [vmem:[%s288 + $0xf0] sm:$0xff]
                  %321 = vst [vmem:[%s289 + $0x78] sm:$0xff] %v320
                $region86: #{features_as_uncorrelated_variance.1} parent=80 // loop_footer
                  %s287 = sadd.s32 1, %s283
                $region87: #{features_as_uncorrelated_variance.1} parent=80 // loop_footer_branch
                  %282 = sbr.rel target = $region83
                $region88: #{features_as_uncorrelated_variance.1} parent=80 // loop_exit
                  _
              $region81: #{features_as_uncorrelated_variance.1} parent=65 // pred_fallthru
                _
              // Predicated region
              $region89: #{features_as_uncorrelated_variance.1} parent=65 // pred_check
                _
              $region90: #{features_as_uncorrelated_variance.1} parent=65 // pred_check_branch
                %323 = sbr.rel target = $region92
              $region91: #{features_as_uncorrelated_variance.1} parent=65 // pred_region
                _
              $region92: #{features_as_uncorrelated_variance.1} parent=65 // pred_fallthru
                _
            $region66: #{features_as_uncorrelated_variance.1} parent=61 // pred_fallthru
              _
            // Predicated region
            $region67: #{features_as_uncorrelated_variance.1} parent=61 // pred_check
              _
            $region68: #{features_as_uncorrelated_variance.1} parent=61 // pred_check_branch
              %238 = sbr.rel target = $region70
            $region69: #{features_as_uncorrelated_variance.1} parent=61 // pred_region
              loop: start=0, step=1, limit=1
              $region71: #{features_as_uncorrelated_variance.1} parent=69 // loop_pre_header
                _
              $region72: #{features_as_uncorrelated_variance.1} parent=69 // loop_header
                %s241 = sphi 0, %s245
                %p242 = scmp.ge.s32.totalorder %s241, 1
                %s246 = sphi %s232, %s232
                %s247 = sphi %s227, %s227
              $region73: #{features_as_uncorrelated_variance.1} parent=69 // loop_header_branch
                %244 = sbr.rel (%p242) target = $region77
              $region74: #{features_as_uncorrelated_variance.1} parent=69 // loop_body
                %v248 = vld [vmem:[%s246] sm:$0xff]
                %249 = vst [vmem:[%s247] sm:$0xff] %v248
                %v250 = vld [vmem:[%s246 + $0x10] sm:$0xff]
                %251 = vst [vmem:[%s247 + $0x8] sm:$0xff] %v250
                %v252 = vld [vmem:[%s246 + $0x20] sm:$0xff]
                %253 = vst [vmem:[%s247 + $0x10] sm:$0xff] %v252
                %v254 = vld [vmem:[%s246 + $0x30] sm:$0xff]
                %255 = vst [vmem:[%s247 + $0x18] sm:$0xff] %v254
                %v256 = vld [vmem:[%s246 + $0x40] sm:$0xff]
                %257 = vst [vmem:[%s247 + $0x20] sm:$0xff] %v256
                %v258 = vld [vmem:[%s246 + $0x50] sm:$0xff]
                %259 = vst [vmem:[%s247 + $0x28] sm:$0xff] %v258
                %v260 = vld [vmem:[%s246 + $0x60] sm:$0xff]
                %261 = vst [vmem:[%s247 + $0x30] sm:$0xff] %v260
                %v262 = vld [vmem:[%s246 + $0x70] sm:$0xff]
                %263 = vst [vmem:[%s247 + $0x38] sm:$0xff] %v262
                %v264 = vld [vmem:[%s246 + $0x80] sm:$0xff]
                %265 = vst [vmem:[%s247 + $0x40] sm:$0xff] %v264
                %v266 = vld [vmem:[%s246 + $0x90] sm:$0xff]
                %267 = vst [vmem:[%s247 + $0x48] sm:$0xff] %v266
                %v268 = vld [vmem:[%s246 + $0xa0] sm:$0xff]
                %269 = vst [vmem:[%s247 + $0x50] sm:$0xff] %v268
                %v270 = vld [vmem:[%s246 + $0xb0] sm:$0xff]
                %271 = vst [vmem:[%s247 + $0x58] sm:$0xff] %v270
                %v272 = vld [vmem:[%s246 + $0xc0] sm:$0xff]
                %273 = vst [vmem:[%s247 + $0x60] sm:$0xff] %v272
                %v274 = vld [vmem:[%s246 + $0xd0] sm:$0xff]
                %275 = vst [vmem:[%s247 + $0x68] sm:$0xff] %v274
                %v276 = vld [vmem:[%s246 + $0xe0] sm:$0xff]
                %277 = vst [vmem:[%s247 + $0x70] sm:$0xff] %v276
                %v278 = vld [vmem:[%s246 + $0xf0] sm:$0xff]
                %279 = vst [vmem:[%s247 + $0x78] sm:$0xff] %v278
              $region75: #{features_as_uncorrelated_variance.1} parent=69 // loop_footer
                %s245 = sadd.s32 1, %s241
              $region76: #{features_as_uncorrelated_variance.1} parent=69 // loop_footer_branch
                %240 = sbr.rel target = $region72
              $region77: #{features_as_uncorrelated_variance.1} parent=69 // loop_exit
                _
            $region70: #{features_as_uncorrelated_variance.1} parent=61 // pred_fallthru
              _
          $region62: #{features_as_uncorrelated_variance.1} parent=57 // pred_fallthru
            _
          %324 = vnop
        $region58: #{features_as_uncorrelated_variance.1} parent=15 // pred_fallthru
          _
        // Predicated region
        $region93: #{features_as_uncorrelated_variance.1} parent=15 // pred_check
          %p325 = pneg %p99
        $region94: #{features_as_uncorrelated_variance.1} parent=15 // pred_check_branch
          %327 = sbr.rel (%p325) target = $region96
        $region95: #{features_as_uncorrelated_variance.1} parent=15 // pred_region
          %p328 = scmp.lt.s32.totalorder %s20, 1
          %s329 = scalar_select %p328, %s20, 1
          %s330 = scalar_lea.vmem %s2, %s329
        $region96: #{features_as_uncorrelated_variance.1} parent=15 // pred_fallthru
          _
        // Predicated region
        $region97: #{features_as_uncorrelated_variance.1} parent=15 // pred_check
          %p331 = pneg %p125
        $region98: #{features_as_uncorrelated_variance.1} parent=15 // pred_check_branch
          %333 = sbr.rel (%p331) target = $region100
        $region99: #{features_as_uncorrelated_variance.1} parent=15 // pred_region
          %p334 = scmp.lt.s32.totalorder %s20, 1
          %s335 = scalar_select %p334, %s20, 1
          %s336 = scalar_lea.vmem %s3, %s335
        $region100: #{features_as_uncorrelated_variance.1} parent=15 // pred_fallthru
          _
      $region16: #{features_as_uncorrelated_variance.1} parent=5 // pred_fallthru
        _
      %p337 = scmp.le.s32.totalorder 1, %s13
      %p338 = scmp.lt.s32.totalorder %s13, 7
      %p339 = pnand %p337, %p338
      %p340 = pneg %p339
      // Predicated region
      $region101: #{features_as_uncorrelated_variance.1} parent=5 // pred_check
        _
      $region102: #{features_as_uncorrelated_variance.1} parent=5 // pred_check_branch
        %342 = sbr.rel (%p339) target = $region104
      $region103: #{features_as_uncorrelated_variance.1} parent=5 // pred_region
        %s343 = ssub.s32 %s13, 1
        %s344 = sand.u32 %s38, 1
        %s345 = sand.u32 %s38, 1
        %s346 = smul.addr %s345, 16
        %s347 = scalar_lea.vmem [#allocation3], %s346
        // Predicated region
        $region105: #{features_as_uncorrelated_variance.1} parent=103 // pred_check
          %p348 = pneg %p51
        $region106: #{features_as_uncorrelated_variance.1} parent=103 // pred_check_branch
          %350 = sbr.rel (%p348) target = $region108
        $region107: #{features_as_uncorrelated_variance.1} parent=103 // pred_region
          _
        $region108: #{features_as_uncorrelated_variance.1} parent=103 // pred_fallthru
          _
        %s351 = sand.u32 %s66, 1
        %s352 = sand.u32 %s66, 1
        %s353 = smul.addr %s352, 128
        %s354 = scalar_lea.vmem [#allocation4], %s353
        // Predicated region
        $region109: #{features_as_uncorrelated_variance.1} parent=103 // pred_check
          %p355 = pneg %p79
        $region110: #{features_as_uncorrelated_variance.1} parent=103 // pred_check_branch
          %357 = sbr.rel (%p355) target = $region112
        $region111: #{features_as_uncorrelated_variance.1} parent=103 // pred_region
          _
        $region112: #{features_as_uncorrelated_variance.1} parent=103 // pred_fallthru
          _
        %s358 = sand.u32 %s38, 1
        %s359 = sand.u32 %s38, 1
        %s360 = smul.addr %s359, 16
        %s361 = scalar_lea.vmem [#allocation3], %s360
        %p362 = pneg %p51
        %p363 = pneg %p48
        %s364 = sand.u32 %s66, 1
        %s365 = sand.u32 %s66, 1
        %s366 = smul.addr %s365, 128
        %s367 = scalar_lea.vmem [#allocation4], %s366
        %p368 = pneg %p79
        %p369 = pneg %p76
        %p370 = scmp.lt.s32.totalorder %s22, 1
        %s371 = scalar_select %p370, %s22, 1
        %s372 = scalar_lea.vmem %s2, %s371
        %p373 = pneg %p105
        %p374 = pneg %p102
        %p375 = scmp.lt.s32.totalorder %s22, 1
        %s376 = scalar_select %p375, %s22, 1
        %s377 = scalar_lea.vmem %s3, %s376
        %p378 = pneg %p131
        %p379 = pneg %p128
        %p380 = pneg %p157
        %p381 = pneg %p154
        %s382 = sand.u32 %s144, 1
        %s383 = scalar_lea.sflag [#allocation6], %s382
        %s384 = sand.u32 %s144, 1
        %s385 = smul.addr %s384, 16
        %s386 = scalar_lea.vmem [#allocation5], %s385
        %s387 = smul.u32 16, %s23
        %p388 = scmp.lt.s32.totalorder %s22, 1
        %s389 = scalar_select %p388, %s22, 1
        %s390 = scalar_lea.vmem %s2, %s389
        %p391 = scmp.lt.s32.totalorder %s22, 1
        %s392 = scalar_select %p391, %s22, 1
        %s393 = scalar_lea.vmem %s3, %s392
        %p394 = scmp.eq.s32.totalorder %s23, 0
        // Predicated region
        $region113: #{features_as_uncorrelated_variance.1} parent=103 // pred_check
          %p395 = pneg %p394
        $region114: #{features_as_uncorrelated_variance.1} parent=103 // pred_check_branch
          %397 = sbr.rel (%p395) target = $region116
        $region115: #{features_as_uncorrelated_variance.1} parent=103 // pred_region
          %398 = vst [vmem:[#allocation2] sm:$0xff] 0.0
          %399 = vst [vmem:[#allocation2 + $0x8] sm:$0xff] 0.0
        $region116: #{features_as_uncorrelated_variance.1} parent=103 // pred_fallthru
          _
        %v400 = vld [vmem:[#allocation2] sm:$0xff]
        %v401 = vld [vmem:[#allocation2 + $0x8] sm:$0xff]
        %v402 = vld [vmem:[%s347] sm:$0xff]
        %v403 = vld [vmem:[%s347 + $0x8] sm:$0xff]
        %v404 = vld [vmem:[%s354] sm:$0xff]
        %v405 = vld [vmem:[%s354 + $0x8] sm:$0xff]
        %v406 = vld [vmem:[%s354 + $0x10] sm:$0xff]
        %v407 = vld [vmem:[%s354 + $0x18] sm:$0xff]
        %v408 = vld [vmem:[%s354 + $0x20] sm:$0xff]
        %v409 = vld [vmem:[%s354 + $0x28] sm:$0xff]
        %v410 = vld [vmem:[%s354 + $0x30] sm:$0xff]
        %v411 = vld [vmem:[%s354 + $0x38] sm:$0xff]
        %v412 = vld [vmem:[%s354 + $0x40] sm:$0xff]
        %v413 = vld [vmem:[%s354 + $0x48] sm:$0xff]
        %v414 = vld [vmem:[%s354 + $0x50] sm:$0xff]
        %v415 = vld [vmem:[%s354 + $0x58] sm:$0xff]
        %v416 = vld [vmem:[%s354 + $0x60] sm:$0xff]
        %v417 = vld [vmem:[%s354 + $0x68] sm:$0xff]
        %v418 = vld [vmem:[%s354 + $0x70] sm:$0xff]
        %v419 = vld [vmem:[%s354 + $0x78] sm:$0xff]
        %420 = vmatprep.subr.mxu0 0.0
        %421 = vmatpush1.msra.mxu0 %v404
        %422 = vmatprep.subr.mxu0 0.0
        %423 = vmatpush1.msra.mxu0 %v405
        %424 = vmatprep.subr.mxu0 0.0
        %425 = vmatpush1.msra.mxu0 %v406
        %426 = vmatprep.subr.mxu0 0.0
        %427 = vmatpush1.msra.mxu0 %v407
        %428 = vmatprep.subr.mxu0 0.0
        %429 = vmatpush1.msra.mxu0 %v408
        %430 = vmatprep.subr.mxu0 0.0
        %431 = vmatpush1.msra.mxu0 %v409
        %432 = vmatprep.subr.mxu0 0.0
        %433 = vmatpush1.msra.mxu0 %v410
        %434 = vmatprep.subr.mxu0 0.0
        %435 = vmatpush1.msra.mxu0 %v411
        %436 = vmatprep.subr.mxu0 0.0
        %437 = vmatpush1.msra.mxu0 %v412
        %438 = vmatprep.subr.mxu0 0.0
        %439 = vmatpush1.msra.mxu0 %v413
        %440 = vmatprep.subr.mxu0 0.0
        %441 = vmatpush1.msra.mxu0 %v414
        %442 = vmatprep.subr.mxu0 0.0
        %443 = vmatpush1.msra.mxu0 %v415
        %444 = vmatprep.subr.mxu0 0.0
        %445 = vmatpush1.msra.mxu0 %v416
        %446 = vmatprep.subr.mxu0 0.0
        %447 = vmatpush1.msra.mxu0 %v417
        %448 = vmatprep.subr.mxu0 0.0
        %449 = vmatpush1.msra.mxu0 %v418
        %450 = vmatprep.subr.mxu0 0.0
        %451 = vmatpush1.msra.mxu0 %v419
        %452 = vmatprep.subr.mxu0 0.0
        %453 = vmatpush1.msra.mxu0 0.0
        %454 = vmatprep.subr.mxu0 0.0
        %455 = vmatpush1.msra.mxu0 0.0
        %456 = vmatprep.subr.mxu0 0.0
        %457 = vmatpush1.msra.mxu0 0.0
        %458 = vmatprep.subr.mxu0 0.0
        %459 = vmatpush1.msra.mxu0 0.0
        %460 = vmatprep.subr.mxu0 0.0
        %461 = vmatpush1.msra.mxu0 0.0
        %462 = vmatprep.subr.mxu0 0.0
        %463 = vmatpush1.msra.mxu0 0.0
        %464 = vmatprep.subr.mxu0 0.0
        %465 = vmatpush1.msra.mxu0 0.0
        %466 = vmatprep.subr.mxu0 0.0
        %467 = vmatpush1.msra.mxu0 0.0
        %468 = vmatprep.subr.mxu0 0.0
        %469 = vmatpush1.msra.mxu0 0.0
        %470 = vmatprep.subr.mxu0 0.0
        %471 = vmatpush1.msra.mxu0 0.0
        %472 = vmatprep.subr.mxu0 0.0
        %473 = vmatpush1.msra.mxu0 0.0
        %474 = vmatprep.subr.mxu0 0.0
        %475 = vmatpush1.msra.mxu0 0.0
        %476 = vmatprep.subr.mxu0 0.0
        %477 = vmatpush1.msra.mxu0 0.0
        %478 = vmatprep.subr.mxu0 0.0
        %479 = vmatpush1.msra.mxu0 0.0
        %480 = vmatprep.subr.mxu0 0.0
        %481 = vmatpush1.msra.mxu0 0.0
        %482 = vmatprep.subr.mxu0 0.0
        %483 = vmatpush1.msra.mxu0 0.0
        %484 = vmatprep.mubr.f32.mxu0 0.0
        %485 = vmatmul.mubr.f32.gmra.mrb[0].mxu0 %v402
        %v486 = vpop.f32.mrb[0].mxu0
        %v487 = vadd.f32 0.0, %v486
        %v488 = vpop.f32.mrb[0].mxu0
        %489 = vmatprep.mubr.f32.mxu0 0.0
        %490 = vmatmul.mubr.f32.gmra.mrb[0].mxu0 %v403
        %v491 = vpop.f32.mrb[0].mxu0
        %v492 = vadd.f32 0.0, %v491
        %v493 = vpop.f32.mrb[0].mxu0
        %494 = vdwg.mxu0
        %v495 = vadd.f32 %v400, %v487
        %v496 = vadd.f32 %v401, %v492
        %497 = vst [vmem:[#allocation2] sm:$0xff] %v495
        %498 = vst [vmem:[#allocation2 + $0x8] sm:$0xff] %v496
        %p499 = scmp.eq.s32.totalorder %s23, 2
        // Predicated region
        $region117: #{features_as_uncorrelated_variance.1} parent=103 // pred_check
          %p500 = pneg %p499
        $region118: #{features_as_uncorrelated_variance.1} parent=103 // pred_check_branch
          %502 = sbr.rel (%p500) target = $region120
        $region119: #{features_as_uncorrelated_variance.1} parent=103 // pred_region
          %v503 = vld [vmem:[#allocation2] sm:$0xff]
          %v504 = vld [vmem:[#allocation2 + $0x8] sm:$0xff]
          %v505 = vadd.f32 %v503, %v504
          %v506 = vrot.slane %v505, 4
          %v507 = vadd.f32 %v505, %v506
          %v508 = vrot.slane %v507, 2
          %v509 = vadd.f32 %v507, %v508
          %v510 = vrot.slane %v509, 1
          %v511 = vadd.f32 %v509, %v510
          %v512 = vmul.f32 %v511, 0.0625
          %v513 = vsub.f32 %v503, %v512
          %v514 = vsub.f32 %v504, %v512
          %v515 = vmul.f32 %v513, %v513
          %v516 = vmul.f32 %v514, %v514
          %v517 = vadd.f32 %v515, %v516
          %v518 = vrot.slane %v517, 4
          %v519 = vadd.f32 %v517, %v518
          %v520 = vrot.slane %v519, 2
          %v521 = vadd.f32 %v519, %v520
          %v522 = vrot.slane %v521, 1
          %v523 = vadd.f32 %v521, %v522
          %v524 = vmul.f32 %v523, 0.0625
          %v525 = vadd.f32 %v524, 1e-05
          %v526 = vrsqrt.pop %v525
          %v527 = vld [vmem:[%s390] sm:$0x1]
          %v528 = vmul.f32 %v526, %v527
          %v529 = vlaneseq
          %v530 = vshrl.u32 %v529, 7
          %v531 = vsub.s32 0, %v530
          %v532 = vrot.slane %v528, %v531
          %v533 = vmul.f32 %v513, %v532
          %v534 = vmul.f32 %v514, %v532
          %v535 = vld [vmem:[%s393] sm:$0x1]
          %v537 = vlaneseq
          %v538 = vshrl.u32 %v537, 7
          %v539 = vsub.s32 0, %v538
          %v540 = vrot.slane %v535, %v539
          %v542 = vadd.f32 %v533, %v540
          %v543 = vadd.f32 %v534, %v540
          %v544 = vmul.f32 %v542, %v542
          %v545 = vmul.f32 %v543, %v543
          %v546 = vadd.f32 %v544, 0.01
          %v547 = vadd.f32 %v545, 0.01
          %548 = vst [vmem:[%s386] sm:$0xff] %v546
          %549 = vst [vmem:[%s386 + $0x8] sm:$0xff] %v547
        $region120: #{features_as_uncorrelated_variance.1} parent=103 // pred_fallthru
          _
        %s550 = sand.u32 %s144, 1
        %s551 = scalar_lea.sflag [#allocation6], %s550
        %s552 = sand.u32 %s144, 1
        %s553 = smul.addr %s552, 16
        %s554 = scalar_lea.vmem [#allocation5], %s553
        // Predicated region
        $region121: #{features_as_uncorrelated_variance.1} parent=103 // pred_check
          %p555 = pneg %p154
        $region122: #{features_as_uncorrelated_variance.1} parent=103 // pred_check_branch
          %557 = sbr.rel (%p555) target = $region124
        $region123: #{features_as_uncorrelated_variance.1} parent=103 // pred_region
          %s559 = ssub.s32 256, 256
          %560 = vsyncadd %s551, %s559
          %s561 = smul.addr %s22, 128
          %s562 = scalar_lea.hbm %s4, %s561
          %s563 = sshll.u32 %s554, 4
          %s564 = int_to_ptr.vmem [resolvable:$true] %s563
          %569 = dma.vmem_to_hbm [thread:$0]  %s564, 256, %s562, %s551, 128, 256, 8
        $region124: #{features_as_uncorrelated_variance.1} parent=103 // pred_fallthru
          _
      $region104: #{features_as_uncorrelated_variance.1} parent=5 // pred_fallthru
        _
      %p570 = scmp.le.s32.totalorder 2, %s13
      // Predicated region
      $region125: #{features_as_uncorrelated_variance.1} parent=5 // pred_check
        %p571 = pneg %p570
      $region126: #{features_as_uncorrelated_variance.1} parent=5 // pred_check_branch
        %573 = sbr.rel (%p571) target = $region128
      $region127: #{features_as_uncorrelated_variance.1} parent=5 // pred_region
        %s574 = ssub.s32 %s13, 2
        // Predicated region
        $region129: #{features_as_uncorrelated_variance.1} parent=127 // pred_check
          %p575 = pneg %p160
        $region130: #{features_as_uncorrelated_variance.1} parent=127 // pred_check_branch
          %577 = sbr.rel (%p575) target = $region132
        $region131: #{features_as_uncorrelated_variance.1} parent=127 // pred_region
          %s578 = sand.u32 %s145, 1
          %s579 = scalar_lea.sflag [#allocation6], %s578
          %s580 = sand.u32 %s145, 1
          %s581 = smul.addr %s580, 16
          %s582 = scalar_lea.vmem [#allocation5], %s581
          %583 = dma.done %s579, 256
        $region132: #{features_as_uncorrelated_variance.1} parent=127 // pred_fallthru
          _
      $region128: #{features_as_uncorrelated_variance.1} parent=5 // pred_fallthru
        _
    $region6: #{features_as_uncorrelated_variance.1} parent=1 // loop_footer
      %s17 = sadd.s32 1, %s13
    $region7: #{features_as_uncorrelated_variance.1} parent=1 // loop_footer_branch
      %12 = sbr.rel target = $region3
    $region8: #{features_as_uncorrelated_variance.1} parent=1 // loop_exit
      _
    %584 = vsyncpa [#allocation6], 1
    %s585 = scalar_lea.sflag [#allocation6], 1
    %586 = vsyncpa %s585, 1

</llo_original>
